<compile_context>
chip_gen: v7x
topology: tpu7x:2x2x1
jax: 0.10.0
libtpu: 0.0.40
codegen_flags: <defaults>
</compile_context>

<pallas_src>
import jax
import jax.numpy as jnp
from jax import lax
from jax.experimental import pallas as pl
from jax.experimental.pallas import tpu as pltpu


def _broadcast_vocab_kernel(vocab_ref, out_ref):
    # vocab_ref: (num_classes, token_len) — resident block (constant index_map).
    # out_ref:   (bt, num_classes, token_len) — this grid step's output tile.
    bt = out_ref.shape[0]

    def copy_row(i, carry):
        # Per-row copy: one vocab row-stream per batch element; avoids
        # materializing the full (bt, C, T) broadcast (>64 vregs at production
        # shapes) before storing.
        out_ref[i] = vocab_ref[...]
        return carry

    lax.fori_loop(0, bt, copy_row, 0, unroll=True)


def _vmem_budget_bytes() -> int:
    """Per-generation scoped-VMEM budget with headroom."""
    try:
        phys = int(pltpu.get_tpu_info().vmem_capacity_bytes)
    except Exception:
        phys = 64 << 20  # assume v7x (smallest per-TC VMEM) if the query fails
    # v5e/v6e (128 MiB physical) -> 64 MiB scoped; v7x (64 MiB) -> 48 MiB scoped.
    return int(min(64 << 20, (phys * 3) // 4))


def _choose_batch_tile(batch_size: int, requested: int, per_elem_bytes: int,
                       vocab_bytes: int, budget: int) -> int:
    # Output block is double-buffered by the pipeline; assume vocab is too.
    headroom = 4 << 20
    avail = max(budget - 2 * vocab_bytes - headroom, per_elem_bytes)
    max_bt_vmem = max(1, avail // (2 * per_elem_bytes))
    cap = max(1, min(requested, batch_size, int(max_bt_vmem)))
    if batch_size >= 2:
        # Guarantee >= 2 grid steps so ("parallel",) can shard batch tiles over
        # both TensorCores on v7x (no cost on single-TC v5e/v6e).
        cap = max(1, min(cap, pl.cdiv(batch_size, 2)))
    # Prefer a tile that divides batch_size: full (unmasked) final output block.
    for bt in range(cap, 0, -1):
        if batch_size % bt == 0:
            return bt
    return cap


def imagenet_vocabulary_forward(
    images_z: jax.Array,
    vocab_tokens: jax.Array,
    *,
    batch_tile: int = 32,
) -> jax.Array:
    """Pallas equivalent of BaseVocabulary/ImageNetVocabulary.forward.

    Args:
      images_z:     [batch, hidden] image embeddings (values unused, only batch size).
      vocab_tokens: [num_classes, token_len] int32 token ids for the vocabulary.
      batch_tile:   requested batch elements per grid step; actual tile is sized
                    to the generation's VMEM budget and clamped for >= 2 grid steps.

    Returns:
      [batch, num_classes, token_len] int32 — the vocabulary replicated per image,
      i.e. the tensorized form of `[self._words] * batch_size`.
    """
    batch_size = images_z.shape[0]
    num_classes, token_len = vocab_tokens.shape

    if batch_size == 0:
        # PyTorch semantics: empty batch -> empty list of word tensors.
        return jnp.zeros((0, num_classes, token_len), dtype=vocab_tokens.dtype)

    itemsize = jnp.dtype(vocab_tokens.dtype).itemsize
    vocab_bytes = num_classes * token_len * itemsize
    per_elem_bytes = vocab_bytes  # one batch element's output row == one vocab copy
    out_bytes = batch_size * num_classes * token_len * itemsize

    budget = _vmem_budget_bytes()
    bt = _choose_batch_tile(batch_size, batch_tile, per_elem_bytes, vocab_bytes, budget)
    grid = (pl.cdiv(batch_size, bt),)

    # Scoped-VMEM limit: cover 2x output block + 2x vocab with margin, but never
    # exceed the per-generation budget (v7x only has 64 MiB physical per TC).
    needed = 2 * bt * per_elem_bytes + 2 * vocab_bytes
    vmem_limit = int(min(budget, max(2 * needed, 16 << 20)))

    return pl.pallas_call(
        _broadcast_vocab_kernel,
        out_shape=jax.ShapeDtypeStruct(
            (batch_size, num_classes, token_len), vocab_tokens.dtype
        ),
        grid_spec=pltpu.PrefetchScalarGridSpec(
            num_scalar_prefetch=0,
            grid=grid,
            in_specs=[
                # Constant block index -> vocab tile stays resident in VMEM
                # across all grid steps (single DMA in, no re-fetch).
                pl.BlockSpec((num_classes, token_len), lambda b: (0, 0)),
            ],
            # Batch-tiled, lane-dense (token_len multiple of 128) output block;
            # full unmasked stores, one writeback DMA per bt batch elements.
            out_specs=pl.BlockSpec((bt, num_classes, token_len), lambda b: (b, 0, 0)),
        ),
        compiler_params=pltpu.CompilerParams(
            dimension_semantics=("parallel",),  # batch tiles are independent
            vmem_limit_bytes=vmem_limit,
        ),
        cost_estimate=pl.CostEstimate(
            flops=0,
            transcendentals=0,
            bytes_accessed=vocab_bytes + out_bytes,
        ),
    )(vocab_tokens)


if __name__ == "__main__":
    key = jax.random.PRNGKey(0)
    k_img, k_vocab = jax.random.split(key)

    # Small shapes consistent with the module's forward contract.
    batch = 2
    hidden = 32
    num_classes = 16     # synthetic stand-in for the 1000 ImageNet classes
    token_len = 128      # fixed-length, lane-dense token-id encoding per class

    # Deterministic synthetic "class name" token ids (stand-in for metadata.csv).
    vocab_tokens = jax.random.randint(
        k_vocab, (num_classes, token_len), minval=0, maxval=30000, dtype=jnp.int32
    )
    # Image embeddings (images_z); forward() only uses their count.
    images_z = jax.random.normal(k_img, (batch, hidden), dtype=jnp.float32)

    out = imagenet_vocabulary_forward(images_z, vocab_tokens)
    out = jax.block_until_ready(out)

    # Reference semantics: [self._words] * batch_size == tile vocab over batch.
    ref = jnp.broadcast_to(vocab_tokens[None], (batch, num_classes, token_len))
    assert out.shape == (batch, num_classes, token_len)
    assert bool(jnp.array_equal(out, ref))

    print("KERNEL_OK")
</pallas_src>

<mosaic_0001>
module attributes {stable_mosaic.version = 11 : i64} {
  func.func @_broadcast_vocab_kernel(%arg0: i32, %arg1: memref<16x128xi32, #tpu.memory_space<vmem>>, %arg2: memref<1x16x128xi32, #tpu.memory_space<vmem>>) attributes {dimension_semantics = [#tpu.dimension_semantics<parallel>], iteration_bounds = array<i64: 2>, scalar_prefetch = 0 : i64, scratch_operands = 0 : i64, tpu.core_type = #tpu.core_type<tc>, window_params = [{pipeline_mode = #tpu.pipeline_mode<synchronous>, transform_indices = @transform_0, window_bounds = array<i64: 16, 128>}, {transform_indices = @transform_1, window_bounds = array<i64: 1, 16, 128>}]} {
    %c0_i32 = arith.constant 0 : i32
    %c0 = arith.constant 0 : index
    %c0_0 = arith.constant 0 : index
    %0 = vector.load %arg1[%c0, %c0_0] : memref<16x128xi32, #tpu.memory_space<vmem>>, vector<16x128xi32>
    %1 = arith.index_cast %c0_i32 : i32 to index
    %c0_1 = arith.constant 0 : index
    %c0_2 = arith.constant 0 : index
    %2 = vector.load %arg2[%1, %c0_1, %c0_2] : memref<1x16x128xi32, #tpu.memory_space<vmem>>, vector<1x16x128xi32>
    %3 = vector.shape_cast %2 : vector<1x16x128xi32> to vector<16x128xi32>
    %4 = vector.shape_cast %0 : vector<16x128xi32> to vector<1x16x128xi32>
    tpu.vector_store %arg2[%1, %c0_1, %c0_2], %4 {strides = array<i32>} : memref<1x16x128xi32, #tpu.memory_space<vmem>>, vector<1x16x128xi32>,
    %c1_i32 = arith.constant 1 : i32
    return
  }
  func.func @transform_0(%arg0: i32) -> (i32, i32) {
    %c0_i32 = arith.constant 0 : i32
    %c0_i32_0 = arith.constant 0 : i32
    %c0_i32_1 = arith.constant 0 : i32
    return %c0_i32, %c0_i32_0 : i32, i32
  }
  func.func @transform_1(%arg0: i32) -> (i32, i32, i32) {
    %c0_i32 = arith.constant 0 : i32
    %c0_i32_0 = arith.constant 0 : i32
    %c0_i32_1 = arith.constant 0 : i32
    return %arg0, %c0_i32, %c0_i32_0 : i32, i32, i32
  }
}

</mosaic_0001>

<llo_original>
// kernel: tpu_custom_call.1
$region0: #{tpu_custom_call.1}
  #allocation0 [shape = 'u32[]', space=smem, size = 0x4, offset = 0x4, fixed_abs, tag = 'smem constant byte address 0x4 - core index']
  #allocation1 [shape = 'u32[144,128]{1,0:T(1,128)}', space=vmem, size = 0x12000, scoped, tag = 'internal scratch']
  %s0 = inlined_call_operand.hbm [shape: s32[16,128], index: 0, kind: input, shape index: {}]
  %s1 = inlined_call_operand.hbm [shape: s32[2,16,128], index: 1, kind: output, shape index: {}]
  %s2 = sld [smem:[#allocation0]]
  $region41: #{tpu_custom_call.1} parent=0
    _
  %s4 = ssub.s32 1, %s2
  %s5 = scalar_select 0, %s4, %s2
  $region1: #{tpu_custom_call.1} parent=0
    #allocation2 [shape = 'u8[8192]{0}', space=vmem, size = 0x2000, scoped, tag = 'input window, operand 0, single buffered']
    #allocation3 [shape = 's32[2]{0}', space=sflag, size = 0x8, scoped, tag = 'scoped memory for tpu_custom_call.1']
    #allocation4 [shape = 's32[2]{0}', space=sflag, size = 0x8, scoped, tag = 'scoped memory for tpu_custom_call.1']
    #allocation5 [shape = 'u8[16384]{0}', space=vmem, size = 0x4000, scoped, tag = 'output window, operand 0']
    %6 = vsyncpa [#allocation3], 0
    %7 = vsyncpa [#allocation4], 0
    %s8 = scalar_lea.sflag [#allocation4], 1
    %9 = vsyncpa %s8, 0
    loop: start=0, step=1, limit=4
    $region2: #{tpu_custom_call.1} parent=1 // loop_pre_header
      _
    $region3: #{tpu_custom_call.1} parent=1 // loop_header
      %s11 = sphi 0, %s15
      %p12 = scmp.ge.s32.totalorder %s11, 4
      %s19 = sphi 0, %s19
      %s21 = sphi 0, %s19
      %s22 = sphi 0, %s21
      %s36 = sphi 0, %s22
      %s42 = sphi 0, %s44
      %s45 = sphi 0, %s42
      %s46 = sphi 0, %s45
      %s62 = sphi 0, %s46
    $region4: #{tpu_custom_call.1} parent=1 // loop_header_branch
      %14 = sbr.rel (%p12) target = $region8
    $region5: #{tpu_custom_call.1} parent=1 // loop_body
      %s16 = ssub.s32 %s11, 1
      %s17 = ssub.s32 %s11, 2
      %s18 = sadd.s32 %s11, 1
      %s20 = sadd.s32 %s19, 1
      %p23 = scmp.eq.s32.totalorder %s11, 1
      %p24 = scmp.ne.s32.totalorder %s19, %s21
      %p25 = scmp.eq.s32.totalorder %s11, 0
      %p26 = por %p24, %p25
      %p27 = scmp.ne.s32.totalorder %s19, %s21
      %p28 = scmp.eq.s32.totalorder %s16, 1
      %p29 = por %p27, %p28
      %p30 = scmp.ne.s32.totalorder %s21, %s22
      %p31 = scmp.eq.s32.totalorder %s16, 0
      %p32 = por %p30, %p31
      %p33 = scmp.ne.s32.totalorder %s21, %s22
      %p34 = scmp.eq.s32.totalorder %s17, 1
      %p35 = por %p33, %p34
      %p37 = scmp.ne.s32.totalorder %s22, %s36
      %p38 = scmp.eq.s32.totalorder %s17, 0
      %p39 = por %p37, %p38
      %s40 = ssub.s32 %s11, %s18
      %p41 = scmp.eq.s32.totalorder %s40, 0
      %s43 = sadd.s32 %s42, 1
      %s44 = scalar_select %p41, %s42, %s43
      %p47 = pneg %p41
      %p48 = scmp.eq.s32.totalorder %s11, 1
      %p49 = por %p47, %p48
      %p50 = scmp.ne.s32.totalorder %s42, %s45
      %p51 = scmp.eq.s32.totalorder %s11, 0
      %p52 = por %p50, %p51
      %p53 = scmp.ne.s32.totalorder %s42, %s45
      %p54 = scmp.eq.s32.totalorder %s16, 1
      %p55 = por %p53, %p54
      %p56 = scmp.ne.s32.totalorder %s45, %s46
      %p57 = scmp.eq.s32.totalorder %s16, 0
      %p58 = por %p56, %p57
      %p59 = scmp.ne.s32.totalorder %s45, %s46
      %p60 = scmp.eq.s32.totalorder %s17, 1
      %p61 = por %p59, %p60
      %p63 = scmp.ne.s32.totalorder %s46, %s62
      %p64 = scmp.eq.s32.totalorder %s17, 0
      %p65 = por %p63, %p64
      %p66 = scmp.le.s32.totalorder 1, %s11
      %p67 = scmp.lt.s32.totalorder %s11, 3
      %p68 = pnand %p66, %p67
      %p69 = pneg %p68
      // Predicated region
      $region9: #{tpu_custom_call.1} parent=5 // pred_check
        _
      $region10: #{tpu_custom_call.1} parent=5 // pred_check_branch
        %71 = sbr.rel (%p68) target = $region12
      $region11: #{tpu_custom_call.1} parent=5 // pred_region
        %s72 = ssub.s32 %s11, 1
        // Predicated region
        $region13: #{tpu_custom_call.1} parent=11 // pred_check
          %p73 = pneg %p32
        $region14: #{tpu_custom_call.1} parent=11 // pred_check_branch
          %75 = sbr.rel (%p73) target = $region16
        $region15: #{tpu_custom_call.1} parent=11 // pred_region
          %s77 = ssub.s32 256, 256
          %78 = vsyncadd [#allocation3], %s77
          %s79 = sshll.u32 [#allocation2], 4
          %s80 = int_to_ptr.vmem [resolvable:$true] %s79
          %85 = dma.hbm_to_vmem [thread:$0]  %s0, 256, %s80, [#allocation3], 128, 128, 8
        $region16: #{tpu_custom_call.1} parent=11 // pred_fallthru
          _
      $region12: #{tpu_custom_call.1} parent=5 // pred_fallthru
        _
      %p86 = scmp.lt.s32.totalorder %s11, 2
      // Predicated region
      $region17: #{tpu_custom_call.1} parent=5 // pred_check
        %p87 = pneg %p86
      $region18: #{tpu_custom_call.1} parent=5 // pred_check_branch
        %89 = sbr.rel (%p87) target = $region20
      $region19: #{tpu_custom_call.1} parent=5 // pred_region
        _
      $region20: #{tpu_custom_call.1} parent=5 // pred_fallthru
        _
      %p90 = scmp.le.s32.totalorder 1, %s11
      %p91 = scmp.lt.s32.totalorder %s11, 3
      %p92 = pnand %p90, %p91
      %p93 = pneg %p92
      // Predicated region
      $region21: #{tpu_custom_call.1} parent=5 // pred_check
        _
      $region22: #{tpu_custom_call.1} parent=5 // pred_check_branch
        %95 = sbr.rel (%p92) target = $region24
      $region23: #{tpu_custom_call.1} parent=5 // pred_region
        %s96 = ssub.s32 %s11, 1
        // Predicated region
        $region25: #{tpu_custom_call.1} parent=23 // pred_check
          %p97 = pneg %p32
        $region26: #{tpu_custom_call.1} parent=23 // pred_check_branch
          %99 = sbr.rel (%p97) target = $region28
        $region27: #{tpu_custom_call.1} parent=23 // pred_region
          %100 = dma.done [#allocation3], 256
        $region28: #{tpu_custom_call.1} parent=23 // pred_fallthru
          _
        %p101 = pneg %p32
        %p102 = pneg %p29
        %p103 = pneg %p58
        %p104 = pneg %p55
        %s105 = sand.u32 %s45, 1
        %s106 = scalar_lea.sflag [#allocation4], %s105
        %s107 = sand.u32 %s45, 1
        %s108 = smul.addr %s107, 16
        %s109 = scalar_lea.vmem [#allocation5], %s108
        %v110 = vld [vmem:[#allocation2] sm:$0xff]
        %v111 = vld [vmem:[#allocation2 + $0x8] sm:$0xff]
        %112 = vst [vmem:[%s109] sm:$0xff] %v110
        %113 = vst [vmem:[%s109 + $0x8] sm:$0xff] %v111
        %s114 = sand.u32 %s45, 1
        %s115 = scalar_lea.sflag [#allocation4], %s114
        %s116 = sand.u32 %s45, 1
        %s117 = smul.addr %s116, 16
        %s118 = scalar_lea.vmem [#allocation5], %s117
        // Predicated region
        $region29: #{tpu_custom_call.1} parent=23 // pred_check
          %p119 = pneg %p55
        $region30: #{tpu_custom_call.1} parent=23 // pred_check_branch
          %121 = sbr.rel (%p119) target = $region32
        $region31: #{tpu_custom_call.1} parent=23 // pred_region
          %s123 = ssub.s32 256, 256
          %124 = vsyncadd %s115, %s123
          %s125 = smul.addr %s16, 2
          %s126 = smul.addr %s125, 128
          %s127 = scalar_lea.hbm %s1, %s126
          %s128 = sshll.u32 %s118, 4
          %s129 = int_to_ptr.vmem [resolvable:$true] %s128
          %134 = dma.vmem_to_hbm [thread:$0]  %s129, 256, %s127, %s115, 128, 128, 8
        $region32: #{tpu_custom_call.1} parent=23 // pred_fallthru
          _
      $region24: #{tpu_custom_call.1} parent=5 // pred_fallthru
        _
      %p135 = scmp.le.s32.totalorder 2, %s11
      // Predicated region
      $region33: #{tpu_custom_call.1} parent=5 // pred_check
        %p136 = pneg %p135
      $region34: #{tpu_custom_call.1} parent=5 // pred_check_branch
        %138 = sbr.rel (%p136) target = $region36
      $region35: #{tpu_custom_call.1} parent=5 // pred_region
        %s139 = ssub.s32 %s11, 2
        // Predicated region
        $region37: #{tpu_custom_call.1} parent=35 // pred_check
          %p140 = pneg %p61
        $region38: #{tpu_custom_call.1} parent=35 // pred_check_branch
          %142 = sbr.rel (%p140) target = $region40
        $region39: #{tpu_custom_call.1} parent=35 // pred_region
          %s143 = sand.u32 %s46, 1
          %s144 = scalar_lea.sflag [#allocation4], %s143
          %s145 = sand.u32 %s46, 1
          %s146 = smul.addr %s145, 16
          %s147 = scalar_lea.vmem [#allocation5], %s146
          %148 = dma.done %s144, 256
        $region40: #{tpu_custom_call.1} parent=35 // pred_fallthru
          _
      $region36: #{tpu_custom_call.1} parent=5 // pred_fallthru
        _
    $region6: #{tpu_custom_call.1} parent=1 // loop_footer
      %s15 = sadd.s32 1, %s11
    $region7: #{tpu_custom_call.1} parent=1 // loop_footer_branch
      %10 = sbr.rel target = $region3
    $region8: #{tpu_custom_call.1} parent=1 // loop_exit
      _
    %149 = vsyncpa [#allocation3], 1
    %s150 = scalar_lea.sflag [#allocation3], 1
    %151 = vsyncpa %s150, 1
    %152 = vsyncpa [#allocation4], 1
    %s153 = scalar_lea.sflag [#allocation4], 1
    %154 = vsyncpa %s153, 1

</llo_original>
